<compile_context>
chip_gen: v7x
topology: tpu7x:2x2x1
jax: 0.10.0
libtpu: 0.0.40
codegen_flags: <defaults>
</compile_context>

<pallas_src>
import jax
import jax.numpy as jnp
from jax.experimental import pallas as pl
from jax.experimental.pallas import tpu as pltpu


def _scale_bias_kernel(x_ref, w_ref, b_ref, o_ref):
    # x_ref: (B_blk, 1, T)   input pixels for B_blk images (lane-dense rows)
    # w_ref: (C2, 1)         folded per-output-channel scale
    # b_ref: (C2, 1)         folded bias (includes the "+2")
    # o_ref: (B_blk, C2, T)  NCHW output slab (lane-dense)
    o_ref[...] = (w_ref[...] * x_ref[...] + b_ref[...]).astype(o_ref.dtype)


def fused_model_forward(x_nchw, w1, b1, w2, b2, *, tile_budget_bytes=2 << 20):
    """x_nchw: (N, 1, H, W) f32. w1: (C1, 1), b1: (C1,), w2: (C2, C1), b2: (C2,)."""
    N, Cin, H, W = x_nchw.shape
    assert Cin == 1, "module spec fixes Conv2d(1, 8, 1)"
    C2 = w2.shape[0]
    HW = H * W

    # Algebraic fold of both 1x1 convs + biases + (+2) in the wrapper (tiny matmuls).
    w_comb = (w2 @ w1[:, 0]).reshape(C2, 1)          # (C2, 1)
    b_comb = (w2 @ b1 + b2 + 2.0).reshape(C2, 1)     # (C2, 1)

    # --- tiling choices -------------------------------------------------------
    LANE = 128
    # Pad HW up to a multiple of 128 so every output store is lane-dense.
    HW_pad = (-(-HW // LANE)) * LANE
    # HW tile T: whole (padded) image if small, else 64K lanes (2 MiB f32 output
    # slab per image row; double-buffered in+out ~4.5 MiB -> safe on v7x VMEM).
    T_MAX = 64 * 1024
    if HW_pad <= T_MAX:
        T = HW_pad
    else:
        T = T_MAX
        HW_pad = (-(-HW_pad // T)) * T               # make T divide padded HW

    # Batch block: pack images per grid step until the output tile is ~2 MiB.
    desired = max(1, min(N, tile_budget_bytes // (C2 * T * 4)))
    B_blk = 1
    for d in range(desired, 0, -1):                  # largest divisor of N <= desired
        if N % d == 0:
            B_blk = d
            break

    grid = (N // B_blk, HW_pad // T)
    # -------------------------------------------------------------------------

    # Cin == 1 -> NCHW input is already "channel row per image": free reshape.
    x_view = x_nchw.reshape(N, 1, HW)
    if HW_pad != HW:
        x_view = jnp.pad(x_view, ((0, 0), (0, 0), (0, HW_pad - HW)))

    cost = pl.CostEstimate(
        flops=2 * N * C2 * HW_pad,
        bytes_accessed=4 * (N * HW_pad + N * C2 * HW_pad + 2 * C2),
        transcendentals=0,
    )

    out = pl.pallas_call(
        _scale_bias_kernel,
        out_shape=jax.ShapeDtypeStruct((N, C2, HW_pad), x_nchw.dtype),
        grid=grid,
        in_specs=[
            pl.BlockSpec((B_blk, 1, T), lambda n, t: (n, 0, t)),
            pl.BlockSpec((C2, 1), lambda n, t: (0, 0)),   # constant block -> resident
            pl.BlockSpec((C2, 1), lambda n, t: (0, 0)),
        ],
        out_specs=pl.BlockSpec((B_blk, C2, T), lambda n, t: (n, 0, t)),
        compiler_params=pltpu.CompilerParams(
            dimension_semantics=("parallel", "parallel"),
        ),
        cost_estimate=cost,
    )(x_view, w_comb, b_comb)

    # Drop HW padding, then (N, C2, HW) -> (N, C2, H, W): free reshape, already NCHW.
    out = out[:, :, :HW]
    return out.reshape(N, C2, H, W)


def init_params(key):
    """Deterministic init mimicking PyTorch Conv2d default (uniform +/- 1/sqrt(fan_in))."""
    k1, k2, k3, k4 = jax.random.split(key, 4)
    cin, c1, c2 = 1, 8, 8
    bound1 = 1.0 / jnp.sqrt(cin * 1 * 1)
    bound2 = 1.0 / jnp.sqrt(c1 * 1 * 1)
    w1 = jax.random.uniform(k1, (c1, cin), jnp.float32, -bound1, bound1)
    b1 = jax.random.uniform(k2, (c1,), jnp.float32, -bound1, bound1)
    w2 = jax.random.uniform(k3, (c2, c1), jnp.float32, -bound2, bound2)
    b2 = jax.random.uniform(k4, (c2,), jnp.float32, -bound2, bound2)
    return w1, b1, w2, b2


if __name__ == "__main__":
    key = jax.random.PRNGKey(0)
    k_x, k_p = jax.random.split(key)

    # Small shapes consistent with the module: Conv2d expects 1 input channel.
    N, Cin, H, W = 2, 1, 16, 16
    x = jax.random.normal(k_x, (N, Cin, H, W), jnp.float32)
    w1, b1, w2, b2 = init_params(k_p)

    out = fused_model_forward(x, w1, b1, w2, b2)
    out = jax.block_until_ready(out)

    # Reference in plain JAX with the ORIGINAL (unfused) op order:
    # conv1 (1x1 + bias) -> conv2 (1x1 + bias) -> +2.
    x_pix = jnp.transpose(x, (0, 2, 3, 1)).reshape(-1, Cin)      # (N*H*W, 1)
    ref = (x_pix @ w1.T + b1) @ w2.T + b2 + 2.0                  # (N*H*W, 8)
    ref = ref.reshape(N, H, W, 8).transpose(0, 3, 1, 2)          # NCHW
    assert out.shape == (N, 8, H, W)
    assert jnp.allclose(out, ref, atol=1e-5, rtol=1e-5)

    print("KERNEL_OK")
</pallas_src>

<mosaic_0001>
module attributes {stable_mosaic.version = 11 : i64} {
  func.func @_scale_bias_kernel(%arg0: i32, %arg1: i32, %arg2: memref<2x1x256xf32, #tpu.memory_space<vmem>>, %arg3: memref<8x1xf32, #tpu.memory_space<vmem>>, %arg4: memref<8x1xf32, #tpu.memory_space<vmem>>, %arg5: memref<2x8x256xf32, #tpu.memory_space<vmem>>) attributes {dimension_semantics = [#tpu.dimension_semantics<parallel>, #tpu.dimension_semantics<parallel>], iteration_bounds = array<i64: 1, 1>, scalar_prefetch = 0 : i64, scratch_operands = 0 : i64, tpu.core_type = #tpu.core_type<tc>, window_params = [{transform_indices = @transform_0, window_bounds = array<i64: 2, 1, 256>}, {pipeline_mode = #tpu.pipeline_mode<synchronous>, transform_indices = @transform_1, window_bounds = array<i64: 8, 1>}, {pipeline_mode = #tpu.pipeline_mode<synchronous>, transform_indices = @transform_2, window_bounds = array<i64: 8, 1>}, {transform_indices = @transform_3, window_bounds = array<i64: 2, 8, 256>}]} {
    %c0 = arith.constant 0 : index
    %c0_0 = arith.constant 0 : index
    %0 = vector.load %arg3[%c0, %c0_0] : memref<8x1xf32, #tpu.memory_space<vmem>>, vector<8x1xf32>
    %c0_1 = arith.constant 0 : index
    %c0_2 = arith.constant 0 : index
    %c0_3 = arith.constant 0 : index
    %1 = vector.load %arg2[%c0_1, %c0_2, %c0_3] : memref<2x1x256xf32, #tpu.memory_space<vmem>>, vector<2x1x256xf32>
    %2 = vector.shape_cast %0 : vector<8x1xf32> to vector<1x8x1xf32>
    %3 = vector.broadcast %2 : vector<1x8x1xf32> to vector<2x8x256xf32>
    %4 = vector.broadcast %1 : vector<2x1x256xf32> to vector<2x8x256xf32>
    %5 = arith.mulf %3, %4 : vector<2x8x256xf32>
    %c0_4 = arith.constant 0 : index
    %c0_5 = arith.constant 0 : index
    %6 = vector.load %arg4[%c0_4, %c0_5] : memref<8x1xf32, #tpu.memory_space<vmem>>, vector<8x1xf32>
    %7 = vector.shape_cast %6 : vector<8x1xf32> to vector<1x8x1xf32>
    %8 = vector.broadcast %7 : vector<1x8x1xf32> to vector<2x8x256xf32>
    %9 = arith.addf %5, %8 : vector<2x8x256xf32>
    %c0_6 = arith.constant 0 : index
    %c0_7 = arith.constant 0 : index
    %c0_8 = arith.constant 0 : index
    %10 = vector.load %arg5[%c0_6, %c0_7, %c0_8] : memref<2x8x256xf32, #tpu.memory_space<vmem>>, vector<2x8x256xf32>
    tpu.vector_store %arg5[%c0_6, %c0_7, %c0_8], %9 {strides = array<i32>} : memref<2x8x256xf32, #tpu.memory_space<vmem>>, vector<2x8x256xf32>,
    return
  }
  func.func @transform_0(%arg0: i32, %arg1: i32) -> (i32, i32, i32) {
    %c0_i32 = arith.constant 0 : i32
    %c0_i32_0 = arith.constant 0 : i32
    return %arg0, %c0_i32, %arg1 : i32, i32, i32
  }
  func.func @transform_1(%arg0: i32, %arg1: i32) -> (i32, i32) {
    %c0_i32 = arith.constant 0 : i32
    %c0_i32_0 = arith.constant 0 : i32
    %c0_i32_1 = arith.constant 0 : i32
    return %c0_i32, %c0_i32_0 : i32, i32
  }
  func.func @transform_2(%arg0: i32, %arg1: i32) -> (i32, i32) {
    %c0_i32 = arith.constant 0 : i32
    %c0_i32_0 = arith.constant 0 : i32
    %c0_i32_1 = arith.constant 0 : i32
    return %c0_i32, %c0_i32_0 : i32, i32
  }
  func.func @transform_3(%arg0: i32, %arg1: i32) -> (i32, i32, i32) {
    %c0_i32 = arith.constant 0 : i32
    %c0_i32_0 = arith.constant 0 : i32
    return %arg0, %c0_i32, %arg1 : i32, i32, i32
  }
}

</mosaic_0001>

<llo_original>
// kernel: tpu_custom_call.1
$region0: #{tpu_custom_call.1}
  #allocation0 [shape = 'u32[]', space=smem, size = 0x4, offset = 0x4, fixed_abs, tag = 'smem constant byte address 0x4 - core index']
  #allocation1 [shape = 'u32[144,128]{1,0:T(1,128)}', space=vmem, size = 0x12000, scoped, tag = 'internal scratch']
  %s0 = inlined_call_operand.vmem [shape: f32[2,1,256], index: 0, kind: input, shape index: {}]
  %s1 = inlined_call_operand.vmem [shape: f32[8,1], index: 1, kind: input, shape index: {}]
  %s2 = inlined_call_operand.vmem [shape: f32[8,1], index: 2, kind: input, shape index: {}]
  %s3 = inlined_call_operand.hbm [shape: f32[2,8,256], index: 3, kind: output, shape index: {}]
  %s4 = sld [smem:[#allocation0]]
  $region22: #{tpu_custom_call.1} parent=0
    _
  %s6 = ssub.s32 1, %s4
  %s7 = scalar_select 0, %s6, %s4
  $region1: #{tpu_custom_call.1} parent=0
    #allocation2 [shape = 'u8[16384]{0}', space=vmem, size = 0x4000, scoped, tag = 'output window, operand 0, single buffered']
    #allocation3 [shape = 's32[1]{0}', space=sflag, size = 0x4, scoped, tag = 'scoped memory for tpu_custom_call.1']
    %8 = vsyncpa [#allocation3], 0
    // Predicated region
    $region2: #{tpu_custom_call.1} parent=1 // pred_check
      _
    $region3: #{tpu_custom_call.1} parent=1 // pred_check_branch
      %10 = sbr.rel (0) target = $region5
    $region4: #{tpu_custom_call.1} parent=1 // pred_region
      _
    $region5: #{tpu_custom_call.1} parent=1 // pred_fallthru
      _
    // Predicated region
    $region6: #{tpu_custom_call.1} parent=1 // pred_check
      _
    $region7: #{tpu_custom_call.1} parent=1 // pred_check_branch
      %12 = sbr.rel (0) target = $region9
    $region8: #{tpu_custom_call.1} parent=1 // pred_region
      _
    $region9: #{tpu_custom_call.1} parent=1 // pred_fallthru
      _
    // Predicated region
    $region10: #{tpu_custom_call.1} parent=1 // pred_check
      _
    $region11: #{tpu_custom_call.1} parent=1 // pred_check_branch
      %14 = sbr.rel (0) target = $region13
    $region12: #{tpu_custom_call.1} parent=1 // pred_region
      _
    $region13: #{tpu_custom_call.1} parent=1 // pred_fallthru
      _
    %v15 = vld [vmem:[%s1] sm:$0xff]
    %v16 = vld [vmem:[%s0] sm:$0x3]
    %v17 = vld [vmem:[%s0 + $0x2] sm:$0x3]
    %19 = vset.pattern.permute.xlu0 0
    %20 = vperm.xlu0 %19, %v15
    %v21 = vpop.permute.xlu0 %20
    %v25 = vlaneseq
    %v26 = vshrl.u32 %v25, 7
    %v27 = vsub.s32 0, %v26
    %v28 = vrot.slane %v16, %v27
    %v29 = vlaneseq
    %v30 = vshrl.u32 %v29, 7
    %v31 = vsub.s32 1, %v30
    %v32 = vrot.slane %v16, %v31
    %v33 = vlaneseq
    %v34 = vshrl.u32 %v33, 7
    %v35 = vsub.s32 0, %v34
    %v36 = vrot.slane %v17, %v35
    %v37 = vlaneseq
    %v38 = vshrl.u32 %v37, 7
    %v39 = vsub.s32 1, %v38
    %v40 = vrot.slane %v17, %v39
    %v45 = vmul.f32 %v21, %v28
    %v46 = vmul.f32 %v21, %v32
    %v47 = vmul.f32 %v21, %v36
    %v48 = vmul.f32 %v21, %v40
    %v49 = vld [vmem:[%s2] sm:$0xff]
    %51 = vset.pattern.permute.xlu0 0
    %52 = vperm.xlu0 %51, %v49
    %v53 = vpop.permute.xlu0 %52
    %v55 = vadd.f32 %v45, %v53
    %v56 = vadd.f32 %v46, %v53
    %v57 = vadd.f32 %v47, %v53
    %v58 = vadd.f32 %v48, %v53
    %59 = vst [vmem:[#allocation2] sm:$0xff] %v55
    %60 = vst [vmem:[#allocation2 + $0x8] sm:$0xff] %v56
    %61 = vst [vmem:[#allocation2 + $0x10] sm:$0xff] %v57
    %62 = vst [vmem:[#allocation2 + $0x18] sm:$0xff] %v58
    // Predicated region
    $region14: #{tpu_custom_call.1} parent=1 // pred_check
      _
    $region15: #{tpu_custom_call.1} parent=1 // pred_check_branch
      %64 = sbr.rel (0) target = $region17
    $region16: #{tpu_custom_call.1} parent=1 // pred_region
      %s66 = ssub.s32 512, 512
      %67 = vsyncadd [#allocation3], %s66
      %s68 = sshll.u32 [#allocation2], 4
      %s69 = int_to_ptr.vmem [resolvable:$true] %s68
      %74 = dma.vmem_to_hbm [thread:$0]  %s69, 512, %s3, [#allocation3], 256, 256, 16
    $region17: #{tpu_custom_call.1} parent=1 // pred_fallthru
      _
    // Predicated region
    $region18: #{tpu_custom_call.1} parent=1 // pred_check
      _
    $region19: #{tpu_custom_call.1} parent=1 // pred_check_branch
      %76 = sbr.rel (0) target = $region21
    $region20: #{tpu_custom_call.1} parent=1 // pred_region
      %77 = dma.done [#allocation3], 512
    $region21: #{tpu_custom_call.1} parent=1 // pred_fallthru
      _
    %78 = vsyncpa [#allocation3], 1

</llo_original>
